<compile_context>
chip_gen: v6e
topology: v6e:2x2x1
jax: 0.10.0
libtpu: 0.0.40
codegen_flags: <defaults>
</compile_context>

<pallas_src>
import math

import jax
import jax.numpy as jnp
from jax.experimental import pallas as pl
from jax.experimental.pallas import tpu as pltpu


# ----------------------------------------------------------------------------
# Fused kernel: one grid step == one image.
# refs layout: x_ref, (w_ref, b_ref) * num_layers, mask_ref, sel_ref, o_ref
# ----------------------------------------------------------------------------
def _make_fused_kernel(num_layers, H, W):
    HW = H * W

    def kernel(*refs):
        x_ref = refs[0]
        wb_refs = refs[1:1 + 2 * num_layers]
        mask_ref = refs[1 + 2 * num_layers]      # (8, HW)      0/1 border masks
        sel_ref = refs[2 + 2 * num_layers]       # (HW, Hh*Wh)  pool selection
        o_ref = refs[3 + 2 * num_layers]         # (1, Cout, Hh*Wh)

        act = x_ref[0]                           # (Cin, HW) f32, lane-dense
        for l in range(num_layers):
            w_ref = wb_refs[2 * l]               # (Cout, 9*Cin)
            b_ref = wb_refs[2 * l + 1]           # (Cout, 1)

            # Build the (9*Cin, HW) im2col slab with lane rolls + border masks.
            taps = []
            for k in range(9):
                dh, dw = divmod(k, 3)
                off = (dh - 1) * W + (dw - 1)    # flat spatial source offset
                if off == 0:
                    taps.append(act)             # center tap: no shift, no mask
                else:
                    t = pltpu.roll(act, shift=(-off) % HW, axis=1)   # XLU roll
                    row = k if k < 4 else k - 1  # mask rows skip the center tap
                    t = t * mask_ref[pl.ds(row, 1), :]               # zero border
                    taps.append(t)
            slab = jnp.concatenate(taps, axis=0)                     # (9*Cin, HW)

            # ONE MXU matmul per layer, K = 9*Cin, N = HW (full lanes).
            acc = jnp.dot(w_ref[...], slab, preferred_element_type=jnp.float32)
            act = jnp.maximum(acc + b_ref[...], 0.0)                 # (Cout, HW)

        # ---- MaxPool 2x2 stride 2: lane rolls + VPU max + MXU compaction ----
        m1 = jnp.maximum(act, pltpu.roll(act, shift=HW - 1, axis=1))  # (w, w+1)
        m2 = jnp.maximum(m1, pltpu.roll(m1, shift=HW - W, axis=1))    # (h, h+1)
        pooled = jnp.dot(m2, sel_ref[...], preferred_element_type=jnp.float32)
        o_ref[0] = pooled.astype(o_ref.dtype)                         # (Cout, Hh*Wh)

    return kernel


# ----------------------------------------------------------------------------
# Wrapper: NCHW in/out, one fused pallas_call.
# params: list of (w_hwio (3,3,Cin,Cout), b (Cout,)) per conv layer.
# ----------------------------------------------------------------------------
def n_conv_forward(x_nchw, params):
    B, Cin, H, W = (int(d) for d in x_nchw.shape)
    assert H % 2 == 0 and W % 2 == 0
    HW = H * W
    Hh, Wh = H // 2, W // 2
    num_layers = len(params)

    # Pad first-layer input channels up to a multiple of 8 (sublane alignment of
    # the concatenated im2col taps); padded channels are zero with zero weights.
    cin0 = int(params[0][0].shape[2])
    assert cin0 == Cin
    cin0_p = -(-cin0 // 8) * 8
    x = x_nchw.astype(jnp.float32)
    if cin0_p != cin0:
        x = jnp.pad(x, ((0, 0), (0, cin0_p - cin0), (0, 0), (0, 0)))
    x = x.reshape(B, cin0_p, HW)                 # channels-first, lane-dense

    inputs = [x]
    in_specs = [pl.BlockSpec((1, cin0_p, HW), lambda i: (i, 0, 0))]
    for l, (w_hwio, b) in enumerate(params):
        cin, cout = int(w_hwio.shape[2]), int(w_hwio.shape[3])
        cin_p = cin0_p if l == 0 else cin
        if cin_p != cin:
            w_hwio = jnp.pad(w_hwio, ((0, 0), (0, 0), (0, cin_p - cin), (0, 0)))
        # (3,3,Cin,Cout) -> (Cout, 9*Cin); column index = (dh*3+dw)*Cin + ci,
        # matching the slab row order built in the kernel.
        w2d = jnp.transpose(w_hwio, (3, 0, 1, 2)).reshape(cout, 9 * cin_p)
        inputs.append(w2d.astype(jnp.float32))
        inputs.append(b.reshape(cout, 1).astype(jnp.float32))
        in_specs.append(pl.BlockSpec((cout, 9 * cin_p), lambda i: (0, 0)))
        in_specs.append(pl.BlockSpec((cout, 1), lambda i: (0, 0)))
    Cout = int(params[-1][0].shape[3])

    # 0/1 border masks for the 8 non-center taps (row order: k=0..8 skipping 4).
    p = jnp.arange(HW)
    hh, ww = p // W, p % W

    def tap_mask(dh, dw):
        m = jnp.ones((HW,), jnp.float32)
        if dh == 0:
            m = m * (hh != 0)
        if dh == 2:
            m = m * (hh != H - 1)
        if dw == 0:
            m = m * (ww != 0)
        if dw == 2:
            m = m * (ww != W - 1)
        return m

    tapmask = jnp.stack([tap_mask(*divmod(k, 3)) for k in range(9) if k != 4])
    inputs.append(tapmask.astype(jnp.float32))                       # (8, HW)
    in_specs.append(pl.BlockSpec((8, HW), lambda i: (0, 0)))

    # MaxPool "keep even (h, w)" one-hot selection matrix: (HW, Hh*Wh).
    q = jnp.arange(Hh * Wh)
    src = 2 * (q // Wh) * W + 2 * (q % Wh)
    sel = (p[:, None] == src[None, :]).astype(jnp.float32)
    inputs.append(sel)
    in_specs.append(pl.BlockSpec((HW, Hh * Wh), lambda i: (0, 0)))

    out = pl.pallas_call(
        _make_fused_kernel(num_layers, H, W),
        out_shape=jax.ShapeDtypeStruct((B, Cout, Hh * Wh), jnp.float32),
        grid=(B,),
        in_specs=in_specs,
        out_specs=pl.BlockSpec((1, Cout, Hh * Wh), lambda i: (i, 0, 0)),
        compiler_params=pltpu.CompilerParams(
            dimension_semantics=("parallel",)),
    )(*inputs)

    return out.reshape(B, Cout, Hh, Wh)          # already channels-first


# Pure-JAX reference for validation.
def n_conv_reference(x_nchw, params):
    x = jnp.transpose(x_nchw, (0, 2, 3, 1))
    for w_hwio, b in params:
        x = jax.lax.conv_general_dilated(
            x, w_hwio, window_strides=(1, 1), padding="SAME",
            dimension_numbers=("NHWC", "HWIO", "NHWC"))
        x = jax.nn.relu(x + b[None, None, None, :])
    x = jax.lax.reduce_window(x, -jnp.inf, jax.lax.max,
                              (1, 2, 2, 1), (1, 2, 2, 1), "VALID")
    return jnp.transpose(x, (0, 3, 1, 2))


if __name__ == "__main__":
    in_channels, out_channels, N = 4, 8, 2
    B, H, W = 2, 16, 16

    key = jax.random.PRNGKey(0)
    keys = jax.random.split(key, 1 + 2 * N)

    x = jax.random.normal(keys[0], (B, in_channels, H, W), jnp.float32)

    # Deterministic parameter init (HWIO weight layout).
    params = []
    cin = in_channels
    for layer in range(N):
        wk, bk = keys[1 + 2 * layer], keys[2 + 2 * layer]
        fan_in = 9 * cin
        w = jax.random.normal(wk, (3, 3, cin, out_channels), jnp.float32)
        w = w * (1.0 / math.sqrt(fan_in))
        b = jax.random.normal(bk, (out_channels,), jnp.float32) * 0.1
        params.append((w, b))
        cin = out_channels

    out = jax.block_until_ready(n_conv_forward(x, params))

    ref = jax.block_until_ready(n_conv_reference(x, params))
    assert out.shape == (B, out_channels, H // 2, W // 2), out.shape
    max_err = float(jnp.max(jnp.abs(out - ref)))
    if max_err > 1e-3:
        raise AssertionError(f"Pallas output mismatch, max abs err = {max_err}")

    print("KERNEL_OK")
</pallas_src>

<mosaic_0001>
module attributes {stable_mosaic.version = 11 : i64} {
  func.func @kernel(%arg0: i32, %arg1: memref<1x8x256xf32, #tpu.memory_space<vmem>>, %arg2: memref<8x72xf32, #tpu.memory_space<vmem>>, %arg3: memref<8x1xf32, #tpu.memory_space<vmem>>, %arg4: memref<8x72xf32, #tpu.memory_space<vmem>>, %arg5: memref<8x1xf32, #tpu.memory_space<vmem>>, %arg6: memref<8x256xf32, #tpu.memory_space<vmem>>, %arg7: memref<256x64xf32, #tpu.memory_space<vmem>>, %arg8: memref<1x8x64xf32, #tpu.memory_space<vmem>>) attributes {dimension_semantics = [#tpu.dimension_semantics<parallel>], iteration_bounds = array<i64: 2>, scalar_prefetch = 0 : i64, scratch_operands = 0 : i64, tpu.core_type = #tpu.core_type<tc>, window_params = [{transform_indices = @transform_0, window_bounds = array<i64: 1, 8, 256>}, {pipeline_mode = #tpu.pipeline_mode<synchronous>, transform_indices = @transform_1, window_bounds = array<i64: 8, 72>}, {pipeline_mode = #tpu.pipeline_mode<synchronous>, transform_indices = @transform_2, window_bounds = array<i64: 8, 1>}, {pipeline_mode = #tpu.pipeline_mode<synchronous>, transform_indices = @transform_3, window_bounds = array<i64: 8, 72>}, {pipeline_mode = #tpu.pipeline_mode<synchronous>, transform_indices = @transform_4, window_bounds = array<i64: 8, 1>}, {pipeline_mode = #tpu.pipeline_mode<synchronous>, transform_indices = @transform_5, window_bounds = array<i64: 8, 256>}, {pipeline_mode = #tpu.pipeline_mode<synchronous>, transform_indices = @transform_6, window_bounds = array<i64: 256, 64>}, {transform_indices = @transform_7, window_bounds = array<i64: 1, 8, 64>}]} {
    %c0 = arith.constant 0 : index
    %c0_0 = arith.constant 0 : index
    %c0_1 = arith.constant 0 : index
    %0 = vector.load %arg1[%c0, %c0_0, %c0_1] : memref<1x8x256xf32, #tpu.memory_space<vmem>>, vector<1x8x256xf32>
    %1 = vector.shape_cast %0 : vector<1x8x256xf32> to vector<8x256xf32>
    %c17_i32 = arith.constant 17 : i32
    %2 = tpu.dynamic_rotate %1 by %c17_i32 dim 1 : vector<8x256xf32>, i32 -> vector<8x256xf32>
    %c0_2 = arith.constant 0 : index
    %c0_3 = arith.constant 0 : index
    %3 = vector.load %arg6[%c0_2, %c0_3] : memref<8x256xf32, #tpu.memory_space<vmem>>, vector<1x256xf32>
    %4 = vector.broadcast %3 : vector<1x256xf32> to vector<8x256xf32>
    %5 = arith.mulf %2, %4 : vector<8x256xf32>
    %c16_i32 = arith.constant 16 : i32
    %6 = tpu.dynamic_rotate %1 by %c16_i32 dim 1 : vector<8x256xf32>, i32 -> vector<8x256xf32>
    %c1 = arith.constant 1 : index
    %c0_4 = arith.constant 0 : index
    %7 = vector.load %arg6[%c1, %c0_4] : memref<8x256xf32, #tpu.memory_space<vmem>>, vector<1x256xf32>
    %8 = vector.broadcast %7 : vector<1x256xf32> to vector<8x256xf32>
    %9 = arith.mulf %6, %8 : vector<8x256xf32>
    %c15_i32 = arith.constant 15 : i32
    %10 = tpu.dynamic_rotate %1 by %c15_i32 dim 1 : vector<8x256xf32>, i32 -> vector<8x256xf32>
    %c2 = arith.constant 2 : index
    %c0_5 = arith.constant 0 : index
    %11 = vector.load %arg6[%c2, %c0_5] : memref<8x256xf32, #tpu.memory_space<vmem>>, vector<1x256xf32>
    %12 = vector.broadcast %11 : vector<1x256xf32> to vector<8x256xf32>
    %13 = arith.mulf %10, %12 : vector<8x256xf32>
    %c1_i32 = arith.constant 1 : i32
    %14 = tpu.dynamic_rotate %1 by %c1_i32 dim 1 : vector<8x256xf32>, i32 -> vector<8x256xf32>
    %c3 = arith.constant 3 : index
    %c0_6 = arith.constant 0 : index
    %15 = vector.load %arg6[%c3, %c0_6] : memref<8x256xf32, #tpu.memory_space<vmem>>, vector<1x256xf32>
    %16 = vector.broadcast %15 : vector<1x256xf32> to vector<8x256xf32>
    %17 = arith.mulf %14, %16 : vector<8x256xf32>
    %c255_i32 = arith.constant 255 : i32
    %18 = tpu.dynamic_rotate %1 by %c255_i32 dim 1 : vector<8x256xf32>, i32 -> vector<8x256xf32>
    %c4 = arith.constant 4 : index
    %c0_7 = arith.constant 0 : index
    %19 = vector.load %arg6[%c4, %c0_7] : memref<8x256xf32, #tpu.memory_space<vmem>>, vector<1x256xf32>
    %20 = vector.broadcast %19 : vector<1x256xf32> to vector<8x256xf32>
    %21 = arith.mulf %18, %20 : vector<8x256xf32>
    %c241_i32 = arith.constant 241 : i32
    %22 = tpu.dynamic_rotate %1 by %c241_i32 dim 1 : vector<8x256xf32>, i32 -> vector<8x256xf32>
    %c5 = arith.constant 5 : index
    %c0_8 = arith.constant 0 : index
    %23 = vector.load %arg6[%c5, %c0_8] : memref<8x256xf32, #tpu.memory_space<vmem>>, vector<1x256xf32>
    %24 = vector.broadcast %23 : vector<1x256xf32> to vector<8x256xf32>
    %25 = arith.mulf %22, %24 : vector<8x256xf32>
    %c240_i32 = arith.constant 240 : i32
    %26 = tpu.dynamic_rotate %1 by %c240_i32 dim 1 : vector<8x256xf32>, i32 -> vector<8x256xf32>
    %c6 = arith.constant 6 : index
    %c0_9 = arith.constant 0 : index
    %27 = vector.load %arg6[%c6, %c0_9] : memref<8x256xf32, #tpu.memory_space<vmem>>, vector<1x256xf32>
    %28 = vector.broadcast %27 : vector<1x256xf32> to vector<8x256xf32>
    %29 = arith.mulf %26, %28 : vector<8x256xf32>
    %c239_i32 = arith.constant 239 : i32
    %30 = tpu.dynamic_rotate %1 by %c239_i32 dim 1 : vector<8x256xf32>, i32 -> vector<8x256xf32>
    %c7 = arith.constant 7 : index
    %c0_10 = arith.constant 0 : index
    %31 = vector.load %arg6[%c7, %c0_10] : memref<8x256xf32, #tpu.memory_space<vmem>>, vector<1x256xf32>
    %32 = vector.broadcast %31 : vector<1x256xf32> to vector<8x256xf32>
    %33 = arith.mulf %30, %32 : vector<8x256xf32>
    %34 = tpu.concatenate %5, %9, %13, %17, %1, %21, %25, %29, %33 in 0 : vector<8x256xf32>, vector<8x256xf32>, vector<8x256xf32>, vector<8x256xf32>, vector<8x256xf32>, vector<8x256xf32>, vector<8x256xf32>, vector<8x256xf32>, vector<8x256xf32> -> vector<72x256xf32>
    %c0_11 = arith.constant 0 : index
    %c0_12 = arith.constant 0 : index
    %35 = vector.load %arg2[%c0_11, %c0_12] : memref<8x72xf32, #tpu.memory_space<vmem>>, vector<8x72xf32>
    %cst = arith.constant dense<0.000000e+00> : vector<8x256xf32>
    %36 = tpu.matmul %35, %34, %cst {dimension_numbers = #tpu.dot_dimension_numbers<[1], [0], [0], [1], [0, 0, 1, 1], [], []>} : vector<8x72xf32>, vector<72x256xf32>, vector<8x256xf32> -> vector<8x256xf32>
    %c0_13 = arith.constant 0 : index
    %c0_14 = arith.constant 0 : index
    %37 = vector.load %arg3[%c0_13, %c0_14] : memref<8x1xf32, #tpu.memory_space<vmem>>, vector<8x1xf32>
    %38 = vector.broadcast %37 : vector<8x1xf32> to vector<8x256xf32>
    %39 = arith.addf %36, %38 : vector<8x256xf32>
    %cst_15 = arith.constant 0.000000e+00 : f32
    %40 = vector.broadcast %cst_15 : f32 to vector<8x256xf32>
    %41 = arith.maximumf %39, %40 : vector<8x256xf32>
    %c17_i32_16 = arith.constant 17 : i32
    %42 = tpu.dynamic_rotate %41 by %c17_i32_16 dim 1 : vector<8x256xf32>, i32 -> vector<8x256xf32>
    %c0_17 = arith.constant 0 : index
    %c0_18 = arith.constant 0 : index
    %43 = vector.load %arg6[%c0_17, %c0_18] : memref<8x256xf32, #tpu.memory_space<vmem>>, vector<1x256xf32>
    %44 = vector.broadcast %43 : vector<1x256xf32> to vector<8x256xf32>
    %45 = arith.mulf %42, %44 : vector<8x256xf32>
    %c16_i32_19 = arith.constant 16 : i32
    %46 = tpu.dynamic_rotate %41 by %c16_i32_19 dim 1 : vector<8x256xf32>, i32 -> vector<8x256xf32>
    %c1_20 = arith.constant 1 : index
    %c0_21 = arith.constant 0 : index
    %47 = vector.load %arg6[%c1_20, %c0_21] : memref<8x256xf32, #tpu.memory_space<vmem>>, vector<1x256xf32>
    %48 = vector.broadcast %47 : vector<1x256xf32> to vector<8x256xf32>
    %49 = arith.mulf %46, %48 : vector<8x256xf32>
    %c15_i32_22 = arith.constant 15 : i32
    %50 = tpu.dynamic_rotate %41 by %c15_i32_22 dim 1 : vector<8x256xf32>, i32 -> vector<8x256xf32>
    %c2_23 = arith.constant 2 : index
    %c0_24 = arith.constant 0 : index
    %51 = vector.load %arg6[%c2_23, %c0_24] : memref<8x256xf32, #tpu.memory_space<vmem>>, vector<1x256xf32>
    %52 = vector.broadcast %51 : vector<1x256xf32> to vector<8x256xf32>
    %53 = arith.mulf %50, %52 : vector<8x256xf32>
    %c1_i32_25 = arith.constant 1 : i32
    %54 = tpu.dynamic_rotate %41 by %c1_i32_25 dim 1 : vector<8x256xf32>, i32 -> vector<8x256xf32>
    %c3_26 = arith.constant 3 : index
    %c0_27 = arith.constant 0 : index
    %55 = vector.load %arg6[%c3_26, %c0_27] : memref<8x256xf32, #tpu.memory_space<vmem>>, vector<1x256xf32>
    %56 = vector.broadcast %55 : vector<1x256xf32> to vector<8x256xf32>
    %57 = arith.mulf %54, %56 : vector<8x256xf32>
    %c255_i32_28 = arith.constant 255 : i32
    %58 = tpu.dynamic_rotate %41 by %c255_i32_28 dim 1 : vector<8x256xf32>, i32 -> vector<8x256xf32>
    %c4_29 = arith.constant 4 : index
    %c0_30 = arith.constant 0 : index
    %59 = vector.load %arg6[%c4_29, %c0_30] : memref<8x256xf32, #tpu.memory_space<vmem>>, vector<1x256xf32>
    %60 = vector.broadcast %59 : vector<1x256xf32> to vector<8x256xf32>
    %61 = arith.mulf %58, %60 : vector<8x256xf32>
    %c241_i32_31 = arith.constant 241 : i32
    %62 = tpu.dynamic_rotate %41 by %c241_i32_31 dim 1 : vector<8x256xf32>, i32 -> vector<8x256xf32>
    %c5_32 = arith.constant 5 : index
    %c0_33 = arith.constant 0 : index
    %63 = vector.load %arg6[%c5_32, %c0_33] : memref<8x256xf32, #tpu.memory_space<vmem>>, vector<1x256xf32>
    %64 = vector.broadcast %63 : vector<1x256xf32> to vector<8x256xf32>
    %65 = arith.mulf %62, %64 : vector<8x256xf32>
    %c240_i32_34 = arith.constant 240 : i32
    %66 = tpu.dynamic_rotate %41 by %c240_i32_34 dim 1 : vector<8x256xf32>, i32 -> vector<8x256xf32>
    %c6_35 = arith.constant 6 : index
    %c0_36 = arith.constant 0 : index
    %67 = vector.load %arg6[%c6_35, %c0_36] : memref<8x256xf32, #tpu.memory_space<vmem>>, vector<1x256xf32>
    %68 = vector.broadcast %67 : vector<1x256xf32> to vector<8x256xf32>
    %69 = arith.mulf %66, %68 : vector<8x256xf32>
    %c239_i32_37 = arith.constant 239 : i32
    %70 = tpu.dynamic_rotate %41 by %c239_i32_37 dim 1 : vector<8x256xf32>, i32 -> vector<8x256xf32>
    %c7_38 = arith.constant 7 : index
    %c0_39 = arith.constant 0 : index
    %71 = vector.load %arg6[%c7_38, %c0_39] : memref<8x256xf32, #tpu.memory_space<vmem>>, vector<1x256xf32>
    %72 = vector.broadcast %71 : vector<1x256xf32> to vector<8x256xf32>
    %73 = arith.mulf %70, %72 : vector<8x256xf32>
    %74 = tpu.concatenate %45, %49, %53, %57, %41, %61, %65, %69, %73 in 0 : vector<8x256xf32>, vector<8x256xf32>, vector<8x256xf32>, vector<8x256xf32>, vector<8x256xf32>, vector<8x256xf32>, vector<8x256xf32>, vector<8x256xf32>, vector<8x256xf32> -> vector<72x256xf32>
    %c0_40 = arith.constant 0 : index
    %c0_41 = arith.constant 0 : index
    %75 = vector.load %arg4[%c0_40, %c0_41] : memref<8x72xf32, #tpu.memory_space<vmem>>, vector<8x72xf32>
    %cst_42 = arith.constant dense<0.000000e+00> : vector<8x256xf32>
    %76 = tpu.matmul %75, %74, %cst_42 {dimension_numbers = #tpu.dot_dimension_numbers<[1], [0], [0], [1], [0, 0, 1, 1], [], []>} : vector<8x72xf32>, vector<72x256xf32>, vector<8x256xf32> -> vector<8x256xf32>
    %c0_43 = arith.constant 0 : index
    %c0_44 = arith.constant 0 : index
    %77 = vector.load %arg5[%c0_43, %c0_44] : memref<8x1xf32, #tpu.memory_space<vmem>>, vector<8x1xf32>
    %78 = vector.broadcast %77 : vector<8x1xf32> to vector<8x256xf32>
    %79 = arith.addf %76, %78 : vector<8x256xf32>
    %cst_45 = arith.constant 0.000000e+00 : f32
    %80 = vector.broadcast %cst_45 : f32 to vector<8x256xf32>
    %81 = arith.maximumf %79, %80 : vector<8x256xf32>
    %c255_i32_46 = arith.constant 255 : i32
    %82 = tpu.dynamic_rotate %81 by %c255_i32_46 dim 1 : vector<8x256xf32>, i32 -> vector<8x256xf32>
    %83 = arith.maximumf %81, %82 : vector<8x256xf32>
    %c240_i32_47 = arith.constant 240 : i32
    %84 = tpu.dynamic_rotate %83 by %c240_i32_47 dim 1 : vector<8x256xf32>, i32 -> vector<8x256xf32>
    %85 = arith.maximumf %83, %84 : vector<8x256xf32>
    %c0_48 = arith.constant 0 : index
    %c0_49 = arith.constant 0 : index
    %86 = vector.load %arg7[%c0_48, %c0_49] : memref<256x64xf32, #tpu.memory_space<vmem>>, vector<256x64xf32>
    %cst_50 = arith.constant dense<0.000000e+00> : vector<8x64xf32>
    %87 = tpu.matmul %85, %86, %cst_50 {dimension_numbers = #tpu.dot_dimension_numbers<[1], [0], [0], [1], [0, 0, 1, 1], [], []>} : vector<8x256xf32>, vector<256x64xf32>, vector<8x64xf32> -> vector<8x64xf32>
    %c0_51 = arith.constant 0 : index
    %c0_52 = arith.constant 0 : index
    %c0_53 = arith.constant 0 : index
    %88 = vector.load %arg8[%c0_51, %c0_52, %c0_53] : memref<1x8x64xf32, #tpu.memory_space<vmem>>, vector<1x8x64xf32>
    %89 = vector.shape_cast %88 : vector<1x8x64xf32> to vector<8x64xf32>
    %90 = vector.shape_cast %87 : vector<8x64xf32> to vector<1x8x64xf32>
    tpu.vector_store %arg8[%c0_51, %c0_52, %c0_53], %90 {strides = array<i32>} : memref<1x8x64xf32, #tpu.memory_space<vmem>>, vector<1x8x64xf32>,
    return
  }
  func.func @transform_0(%arg0: i32) -> (i32, i32, i32) {
    %c0_i32 = arith.constant 0 : i32
    %c0_i32_0 = arith.constant 0 : i32
    %c0_i32_1 = arith.constant 0 : i32
    return %arg0, %c0_i32, %c0_i32_0 : i32, i32, i32
  }
  func.func @transform_1(%arg0: i32) -> (i32, i32) {
    %c0_i32 = arith.constant 0 : i32
    %c0_i32_0 = arith.constant 0 : i32
    %c0_i32_1 = arith.constant 0 : i32
    return %c0_i32, %c0_i32_0 : i32, i32
  }
  func.func @transform_2(%arg0: i32) -> (i32, i32) {
    %c0_i32 = arith.constant 0 : i32
    %c0_i32_0 = arith.constant 0 : i32
    %c0_i32_1 = arith.constant 0 : i32
    return %c0_i32, %c0_i32_0 : i32, i32
  }
  func.func @transform_3(%arg0: i32) -> (i32, i32) {
    %c0_i32 = arith.constant 0 : i32
    %c0_i32_0 = arith.constant 0 : i32
    %c0_i32_1 = arith.constant 0 : i32
    return %c0_i32, %c0_i32_0 : i32, i32
  }
  func.func @transform_4(%arg0: i32) -> (i32, i32) {
    %c0_i32 = arith.constant 0 : i32
    %c0_i32_0 = arith.constant 0 : i32
    %c0_i32_1 = arith.constant 0 : i32
    return %c0_i32, %c0_i32_0 : i32, i32
  }
  func.func @transform_5(%arg0: i32) -> (i32, i32) {
    %c0_i32 = arith.constant 0 : i32
    %c0_i32_0 = arith.constant 0 : i32
    %c0_i32_1 = arith.constant 0 : i32
    return %c0_i32, %c0_i32_0 : i32, i32
  }
  func.func @transform_6(%arg0: i32) -> (i32, i32) {
    %c0_i32 = arith.constant 0 : i32
    %c0_i32_0 = arith.constant 0 : i32
    %c0_i32_1 = arith.constant 0 : i32
    return %c0_i32, %c0_i32_0 : i32, i32
  }
  func.func @transform_7(%arg0: i32) -> (i32, i32, i32) {
    %c0_i32 = arith.constant 0 : i32
    %c0_i32_0 = arith.constant 0 : i32
    %c0_i32_1 = arith.constant 0 : i32
    return %arg0, %c0_i32, %c0_i32_0 : i32, i32, i32
  }
}

</mosaic_0001>

<llo_original>
// kernel: tpu_custom_call.1
$region0: #{tpu_custom_call.1}
  #allocation0 [shape = 'u32[]', space=smem, size = 0x4, offset = 0x4, fixed_abs, tag = 'smem constant byte address 0x4 - core index']
  #allocation1 [shape = 'u32[144,128]{1,0:T(1,128)}', space=vmem, size = 0x12000, scoped, tag = 'internal scratch']
  %s0 = inlined_call_operand.vmem [shape: f32[2,8,256], index: 0, kind: input, shape index: {}]
  %s1 = inlined_call_operand.vmem [shape: f32[8,72], index: 1, kind: input, shape index: {}]
  %s2 = inlined_call_operand.vmem [shape: f32[8,1], index: 2, kind: input, shape index: {}]
  %s3 = inlined_call_operand.vmem [shape: f32[8,72], index: 3, kind: input, shape index: {}]
  %s4 = inlined_call_operand.vmem [shape: f32[8,1], index: 4, kind: input, shape index: {}]
  %s5 = inlined_call_operand.vmem [shape: f32[8,256], index: 5, kind: input, shape index: {}]
  %s6 = inlined_call_operand.vmem [shape: f32[256,64], index: 6, kind: input, shape index: {}]
  %s7 = inlined_call_operand.hbm [shape: f32[2,8,64], index: 7, kind: output, shape index: {}]
  %s8 = sld [smem:[#allocation0]]
  $region61: #{tpu_custom_call.1} parent=0
    _
  %s10 = ssub.s32 1, %s8
  %s11 = scalar_select 0, %s10, %s8
  $region1: #{tpu_custom_call.1} parent=0
    #allocation2 [shape = 'u8[8192]{0}', space=vmem, size = 0x2000, scoped, tag = 'output window, operand 0']
    #allocation3 [shape = 's32[2]{0}', space=sflag, size = 0x8, scoped, tag = 'scoped memory for tpu_custom_call.1']
    %12 = vsyncpa [#allocation3], 0
    %s13 = scalar_lea.sflag [#allocation3], 1
    %14 = vsyncpa %s13, 0
    loop: start=0, step=1, limit=4
    $region2: #{tpu_custom_call.1} parent=1 // loop_pre_header
      _
    $region3: #{tpu_custom_call.1} parent=1 // loop_header
      %s16 = sphi 0, %s20
      %p17 = scmp.ge.s32.totalorder %s16, 4
      %s26 = sphi 0, %s28
      %s29 = sphi 0, %s26
      %s30 = sphi 0, %s29
      %s46 = sphi 0, %s30
      %s50 = sphi 0, %s50
      %s52 = sphi 0, %s50
      %s53 = sphi 0, %s52
      %s67 = sphi 0, %s53
      %s71 = sphi 0, %s71
      %s73 = sphi 0, %s71
      %s74 = sphi 0, %s73
      %s88 = sphi 0, %s74
      %s92 = sphi 0, %s92
      %s94 = sphi 0, %s92
      %s95 = sphi 0, %s94
      %s109 = sphi 0, %s95
      %s113 = sphi 0, %s113
      %s115 = sphi 0, %s113
      %s116 = sphi 0, %s115
      %s130 = sphi 0, %s116
      %s134 = sphi 0, %s134
      %s136 = sphi 0, %s134
      %s137 = sphi 0, %s136
      %s151 = sphi 0, %s137
      %s155 = sphi 0, %s155
      %s157 = sphi 0, %s155
      %s158 = sphi 0, %s157
      %s172 = sphi 0, %s158
      %s178 = sphi 0, %s180
      %s181 = sphi 0, %s178
      %s182 = sphi 0, %s181
      %s198 = sphi 0, %s182
    $region4: #{tpu_custom_call.1} parent=1 // loop_header_branch
      %19 = sbr.rel (%p17) target = $region8
    $region5: #{tpu_custom_call.1} parent=1 // loop_body
      %s21 = ssub.s32 %s16, 1
      %s22 = ssub.s32 %s16, 2
      %s23 = sadd.s32 %s16, 1
      %s24 = ssub.s32 %s16, %s23
      %p25 = scmp.eq.s32.totalorder %s24, 0
      %s27 = sadd.s32 %s26, 1
      %s28 = scalar_select %p25, %s26, %s27
      %p31 = pneg %p25
      %p32 = scmp.eq.s32.totalorder %s16, 1
      %p33 = por %p31, %p32
      %p34 = scmp.ne.s32.totalorder %s26, %s29
      %p35 = scmp.eq.s32.totalorder %s16, 0
      %p36 = por %p34, %p35
      %p37 = scmp.ne.s32.totalorder %s26, %s29
      %p38 = scmp.eq.s32.totalorder %s21, 1
      %p39 = por %p37, %p38
      %p40 = scmp.ne.s32.totalorder %s29, %s30
      %p41 = scmp.eq.s32.totalorder %s21, 0
      %p42 = por %p40, %p41
      %p43 = scmp.ne.s32.totalorder %s29, %s30
      %p44 = scmp.eq.s32.totalorder %s22, 1
      %p45 = por %p43, %p44
      %p47 = scmp.ne.s32.totalorder %s30, %s46
      %p48 = scmp.eq.s32.totalorder %s22, 0
      %p49 = por %p47, %p48
      %s51 = sadd.s32 %s50, 1
      %p54 = scmp.eq.s32.totalorder %s16, 1
      %p55 = scmp.ne.s32.totalorder %s50, %s52
      %p56 = scmp.eq.s32.totalorder %s16, 0
      %p57 = por %p55, %p56
      %p58 = scmp.ne.s32.totalorder %s50, %s52
      %p59 = scmp.eq.s32.totalorder %s21, 1
      %p60 = por %p58, %p59
      %p61 = scmp.ne.s32.totalorder %s52, %s53
      %p62 = scmp.eq.s32.totalorder %s21, 0
      %p63 = por %p61, %p62
      %p64 = scmp.ne.s32.totalorder %s52, %s53
      %p65 = scmp.eq.s32.totalorder %s22, 1
      %p66 = por %p64, %p65
      %p68 = scmp.ne.s32.totalorder %s53, %s67
      %p69 = scmp.eq.s32.totalorder %s22, 0
      %p70 = por %p68, %p69
      %s72 = sadd.s32 %s71, 1
      %p75 = scmp.eq.s32.totalorder %s16, 1
      %p76 = scmp.ne.s32.totalorder %s71, %s73
      %p77 = scmp.eq.s32.totalorder %s16, 0
      %p78 = por %p76, %p77
      %p79 = scmp.ne.s32.totalorder %s71, %s73
      %p80 = scmp.eq.s32.totalorder %s21, 1
      %p81 = por %p79, %p80
      %p82 = scmp.ne.s32.totalorder %s73, %s74
      %p83 = scmp.eq.s32.totalorder %s21, 0
      %p84 = por %p82, %p83
      %p85 = scmp.ne.s32.totalorder %s73, %s74
      %p86 = scmp.eq.s32.totalorder %s22, 1
      %p87 = por %p85, %p86
      %p89 = scmp.ne.s32.totalorder %s74, %s88
      %p90 = scmp.eq.s32.totalorder %s22, 0
      %p91 = por %p89, %p90
      %s93 = sadd.s32 %s92, 1
      %p96 = scmp.eq.s32.totalorder %s16, 1
      %p97 = scmp.ne.s32.totalorder %s92, %s94
      %p98 = scmp.eq.s32.totalorder %s16, 0
      %p99 = por %p97, %p98
      %p100 = scmp.ne.s32.totalorder %s92, %s94
      %p101 = scmp.eq.s32.totalorder %s21, 1
      %p102 = por %p100, %p101
      %p103 = scmp.ne.s32.totalorder %s94, %s95
      %p104 = scmp.eq.s32.totalorder %s21, 0
      %p105 = por %p103, %p104
      %p106 = scmp.ne.s32.totalorder %s94, %s95
      %p107 = scmp.eq.s32.totalorder %s22, 1
      %p108 = por %p106, %p107
      %p110 = scmp.ne.s32.totalorder %s95, %s109
      %p111 = scmp.eq.s32.totalorder %s22, 0
      %p112 = por %p110, %p111
      %s114 = sadd.s32 %s113, 1
      %p117 = scmp.eq.s32.totalorder %s16, 1
      %p118 = scmp.ne.s32.totalorder %s113, %s115
      %p119 = scmp.eq.s32.totalorder %s16, 0
      %p120 = por %p118, %p119
      %p121 = scmp.ne.s32.totalorder %s113, %s115
      %p122 = scmp.eq.s32.totalorder %s21, 1
      %p123 = por %p121, %p122
      %p124 = scmp.ne.s32.totalorder %s115, %s116
      %p125 = scmp.eq.s32.totalorder %s21, 0
      %p126 = por %p124, %p125
      %p127 = scmp.ne.s32.totalorder %s115, %s116
      %p128 = scmp.eq.s32.totalorder %s22, 1
      %p129 = por %p127, %p128
      %p131 = scmp.ne.s32.totalorder %s116, %s130
      %p132 = scmp.eq.s32.totalorder %s22, 0
      %p133 = por %p131, %p132
      %s135 = sadd.s32 %s134, 1
      %p138 = scmp.eq.s32.totalorder %s16, 1
      %p139 = scmp.ne.s32.totalorder %s134, %s136
      %p140 = scmp.eq.s32.totalorder %s16, 0
      %p141 = por %p139, %p140
      %p142 = scmp.ne.s32.totalorder %s134, %s136
      %p143 = scmp.eq.s32.totalorder %s21, 1
      %p144 = por %p142, %p143
      %p145 = scmp.ne.s32.totalorder %s136, %s137
      %p146 = scmp.eq.s32.totalorder %s21, 0
      %p147 = por %p145, %p146
      %p148 = scmp.ne.s32.totalorder %s136, %s137
      %p149 = scmp.eq.s32.totalorder %s22, 1
      %p150 = por %p148, %p149
      %p152 = scmp.ne.s32.totalorder %s137, %s151
      %p153 = scmp.eq.s32.totalorder %s22, 0
      %p154 = por %p152, %p153
      %s156 = sadd.s32 %s155, 1
      %p159 = scmp.eq.s32.totalorder %s16, 1
      %p160 = scmp.ne.s32.totalorder %s155, %s157
      %p161 = scmp.eq.s32.totalorder %s16, 0
      %p162 = por %p160, %p161
      %p163 = scmp.ne.s32.totalorder %s155, %s157
      %p164 = scmp.eq.s32.totalorder %s21, 1
      %p165 = por %p163, %p164
      %p166 = scmp.ne.s32.totalorder %s157, %s158
      %p167 = scmp.eq.s32.totalorder %s21, 0
      %p168 = por %p166, %p167
      %p169 = scmp.ne.s32.totalorder %s157, %s158
      %p170 = scmp.eq.s32.totalorder %s22, 1
      %p171 = por %p169, %p170
      %p173 = scmp.ne.s32.totalorder %s158, %s172
      %p174 = scmp.eq.s32.totalorder %s22, 0
      %p175 = por %p173, %p174
      %s176 = ssub.s32 %s16, %s23
      %p177 = scmp.eq.s32.totalorder %s176, 0
      %s179 = sadd.s32 %s178, 1
      %s180 = scalar_select %p177, %s178, %s179
      %p183 = pneg %p177
      %p184 = scmp.eq.s32.totalorder %s16, 1
      %p185 = por %p183, %p184
      %p186 = scmp.ne.s32.totalorder %s178, %s181
      %p187 = scmp.eq.s32.totalorder %s16, 0
      %p188 = por %p186, %p187
      %p189 = scmp.ne.s32.totalorder %s178, %s181
      %p190 = scmp.eq.s32.totalorder %s21, 1
      %p191 = por %p189, %p190
      %p192 = scmp.ne.s32.totalorder %s181, %s182
      %p193 = scmp.eq.s32.totalorder %s21, 0
      %p194 = por %p192, %p193
      %p195 = scmp.ne.s32.totalorder %s181, %s182
      %p196 = scmp.eq.s32.totalorder %s22, 1
      %p197 = por %p195, %p196
      %p199 = scmp.ne.s32.totalorder %s182, %s198
      %p200 = scmp.eq.s32.totalorder %s22, 0
      %p201 = por %p199, %p200
      %p202 = scmp.le.s32.totalorder 1, %s16
      %p203 = scmp.lt.s32.totalorder %s16, 3
      %p204 = pnand %p202, %p203
      %p205 = pneg %p204
      // Predicated region
      $region9: #{tpu_custom_call.1} parent=5 // pred_check
        _
      $region10: #{tpu_custom_call.1} parent=5 // pred_check_branch
        %207 = sbr.rel (%p204) target = $region12
      $region11: #{tpu_custom_call.1} parent=5 // pred_region
        %s208 = ssub.s32 %s16, 1
        // Predicated region
        $region13: #{tpu_custom_call.1} parent=11 // pred_check
          %p209 = pneg %p63
        $region14: #{tpu_custom_call.1} parent=11 // pred_check_branch
          %211 = sbr.rel (%p209) target = $region16
        $region15: #{tpu_custom_call.1} parent=11 // pred_region
          _
        $region16: #{tpu_custom_call.1} parent=11 // pred_fallthru
          _
        // Predicated region
        $region17: #{tpu_custom_call.1} parent=11 // pred_check
          %p212 = pneg %p84
        $region18: #{tpu_custom_call.1} parent=11 // pred_check_branch
          %214 = sbr.rel (%p212) target = $region20
        $region19: #{tpu_custom_call.1} parent=11 // pred_region
          _
        $region20: #{tpu_custom_call.1} parent=11 // pred_fallthru
          _
        // Predicated region
        $region21: #{tpu_custom_call.1} parent=11 // pred_check
          %p215 = pneg %p105
        $region22: #{tpu_custom_call.1} parent=11 // pred_check_branch
          %217 = sbr.rel (%p215) target = $region24
        $region23: #{tpu_custom_call.1} parent=11 // pred_region
          _
        $region24: #{tpu_custom_call.1} parent=11 // pred_fallthru
          _
        // Predicated region
        $region25: #{tpu_custom_call.1} parent=11 // pred_check
          %p218 = pneg %p126
        $region26: #{tpu_custom_call.1} parent=11 // pred_check_branch
          %220 = sbr.rel (%p218) target = $region28
        $region27: #{tpu_custom_call.1} parent=11 // pred_region
          _
        $region28: #{tpu_custom_call.1} parent=11 // pred_fallthru
          _
        // Predicated region
        $region29: #{tpu_custom_call.1} parent=11 // pred_check
          %p221 = pneg %p147
        $region30: #{tpu_custom_call.1} parent=11 // pred_check_branch
          %223 = sbr.rel (%p221) target = $region32
        $region31: #{tpu_custom_call.1} parent=11 // pred_region
          _
        $region32: #{tpu_custom_call.1} parent=11 // pred_fallthru
          _
        // Predicated region
        $region33: #{tpu_custom_call.1} parent=11 // pred_check
          %p224 = pneg %p168
        $region34: #{tpu_custom_call.1} parent=11 // pred_check_branch
          %226 = sbr.rel (%p224) target = $region36
        $region35: #{tpu_custom_call.1} parent=11 // pred_region
          _
        $region36: #{tpu_custom_call.1} parent=11 // pred_fallthru
          _
      $region12: #{tpu_custom_call.1} parent=5 // pred_fallthru
        _
      %p227 = scmp.lt.s32.totalorder %s16, 2
      // Predicated region
      $region37: #{tpu_custom_call.1} parent=5 // pred_check
        %p228 = pneg %p227
      $region38: #{tpu_custom_call.1} parent=5 // pred_check_branch
        %230 = sbr.rel (%p228) target = $region40
      $region39: #{tpu_custom_call.1} parent=5 // pred_region
        // Predicated region
        $region41: #{tpu_custom_call.1} parent=39 // pred_check
          %p231 = pneg %p36
        $region42: #{tpu_custom_call.1} parent=39 // pred_check_branch
          %233 = sbr.rel (%p231) target = $region44
        $region43: #{tpu_custom_call.1} parent=39 // pred_region
          %p234 = scmp.lt.s32.totalorder %s16, 1
          %s235 = scalar_select %p234, %s16, 1
          %s236 = smul.addr %s235, 2
          %s237 = smul.addr %s236, 8
          %s238 = scalar_lea.vmem %s0, %s237
        $region44: #{tpu_custom_call.1} parent=39 // pred_fallthru
          _
      $region40: #{tpu_custom_call.1} parent=5 // pred_fallthru
        _
      %p239 = scmp.le.s32.totalorder 1, %s16
      %p240 = scmp.lt.s32.totalorder %s16, 3
      %p241 = pnand %p239, %p240
      %p242 = pneg %p241
      // Predicated region
      $region45: #{tpu_custom_call.1} parent=5 // pred_check
        _
      $region46: #{tpu_custom_call.1} parent=5 // pred_check_branch
        %244 = sbr.rel (%p241) target = $region48
      $region47: #{tpu_custom_call.1} parent=5 // pred_region
        %s245 = ssub.s32 %s16, 1
        %p246 = scmp.lt.s32.totalorder %s21, 1
        %s247 = scalar_select %p246, %s21, 1
        %s248 = smul.addr %s247, 2
        %s249 = smul.addr %s248, 8
        %s250 = scalar_lea.vmem %s0, %s249
        %p251 = pneg %p42
        %p252 = pneg %p39
        %p253 = pneg %p63
        %p254 = pneg %p60
        %p255 = pneg %p84
        %p256 = pneg %p81
        %p257 = pneg %p105
        %p258 = pneg %p102
        %p259 = pneg %p126
        %p260 = pneg %p123
        %p261 = pneg %p147
        %p262 = pneg %p144
        %p263 = pneg %p168
        %p264 = pneg %p165
        %p265 = pneg %p194
        %p266 = pneg %p191
        %s267 = sand.u32 %s181, 1
        %s268 = scalar_lea.sflag [#allocation3], %s267
        %s269 = sand.u32 %s181, 1
        %s270 = smul.addr %s269, 8
        %s271 = scalar_lea.vmem [#allocation2], %s270
        %p272 = scmp.lt.s32.totalorder %s21, 1
        %s273 = scalar_select %p272, %s21, 1
        %s274 = smul.addr %s273, 2
        %s275 = smul.addr %s274, 8
        %s276 = scalar_lea.vmem %s0, %s275
        %v277 = vld [vmem:[%s276] sm:$0xff]
        %v278 = vld [vmem:[%s276 + $0x8] sm:$0xff]
        %279 = vrot.lane.b32.xlu0 %v277, 17
        %v280 = vpop.permute.xlu0 %279
        %281 = vrot.lane.b32.xlu0 %v278, 17
        %v282 = vpop.permute.xlu0 %281
        %v283 = vlaneseq
        %v284 = vand.u32 %v283, 127
        %vm285 = vcmp.lt.s32.totalorder %v284, 17
        %v286 = vsel %vm285, %v280, %v282
        %v287 = vsel %vm285, %v282, %v280
        %v288 = vld [vmem:[%s5] ss:$8 sm:$0x3]
        %v290 = vlaneseq
        %v291 = vshrl.u32 %v290, 7
        %v292 = vsub.s32 0, %v291
        %v293 = vrot.slane %v288, %v292
        %v294 = vlaneseq
        %v295 = vshrl.u32 %v294, 7
        %v296 = vsub.s32 1, %v295
        %v297 = vrot.slane %v288, %v296
        %v300 = vmul.f32 %v287, %v293
        %v301 = vmul.f32 %v286, %v297
        %302 = vrot.lane.b32.xlu0 %v277, 16
        %v303 = vpop.permute.xlu0 %302
        %304 = vrot.lane.b32.xlu0 %v278, 16
        %v305 = vpop.permute.xlu0 %304
        %vm306 = vcmp.lt.s32.totalorder %v284, 16
        %v307 = vsel %vm306, %v303, %v305
        %v308 = vsel %vm306, %v305, %v303
        %s309 = scalar_lea.vmem %s5, 1
        %v310 = vld [vmem:[%s309] ss:$8 sm:$0x3]
        %v312 = vlaneseq
        %v313 = vshrl.u32 %v312, 7
        %v314 = vsub.s32 0, %v313
        %v315 = vrot.slane %v310, %v314
        %v316 = vlaneseq
        %v317 = vshrl.u32 %v316, 7
        %v318 = vsub.s32 1, %v317
        %v319 = vrot.slane %v310, %v318
        %v322 = vmul.f32 %v308, %v315
        %v323 = vmul.f32 %v307, %v319
        %324 = vrot.lane.b32.xlu0 %v277, 15
        %v325 = vpop.permute.xlu0 %324
        %326 = vrot.lane.b32.xlu0 %v278, 15
        %v327 = vpop.permute.xlu0 %326
        %vm328 = vcmp.lt.s32.totalorder %v284, 15
        %v329 = vsel %vm328, %v325, %v327
        %v330 = vsel %vm328, %v327, %v325
        %s331 = scalar_lea.vmem %s5, 2
        %v332 = vld [vmem:[%s331] ss:$8 sm:$0x3]
        %v334 = vlaneseq
        %v335 = vshrl.u32 %v334, 7
        %v336 = vsub.s32 0, %v335
        %v337 = vrot.slane %v332, %v336
        %v338 = vlaneseq
        %v339 = vshrl.u32 %v338, 7
        %v340 = vsub.s32 1, %v339
        %v341 = vrot.slane %v332, %v340
        %v344 = vmul.f32 %v330, %v337
        %v345 = vmul.f32 %v329, %v341
        %346 = vrot.lane.b32.xlu0 %v277, 1
        %v347 = vpop.permute.xlu0 %346
        %348 = vrot.lane.b32.xlu0 %v278, 1
        %v349 = vpop.permute.xlu0 %348
        %vm350 = vcmp.lt.s32.totalorder %v284, 1
        %v351 = vsel %vm350, %v347, %v349
        %v352 = vsel %vm350, %v349, %v347
        %s353 = scalar_lea.vmem %s5, 3
        %v354 = vld [vmem:[%s353] ss:$8 sm:$0x3]
        %v356 = vlaneseq
        %v357 = vshrl.u32 %v356, 7
        %v358 = vsub.s32 0, %v357
        %v359 = vrot.slane %v354, %v358
        %v360 = vlaneseq
        %v361 = vshrl.u32 %v360, 7
        %v362 = vsub.s32 1, %v361
        %v363 = vrot.slane %v354, %v362
        %v366 = vmul.f32 %v352, %v359
        %v367 = vmul.f32 %v351, %v363
        %368 = vrot.lane.b32.xlu0 %v277, 127
        %v369 = vpop.permute.xlu0 %368
        %370 = vrot.lane.b32.xlu0 %v278, 127
        %v371 = vpop.permute.xlu0 %370
        %vm372 = vcmp.lt.s32.totalorder %v284, 127
        %v373 = vsel %vm372, %v369, %v371
        %v374 = vsel %vm372, %v371, %v369
        %s375 = scalar_lea.vmem %s5, 4
        %v376 = vld [vmem:[%s375] ss:$8 sm:$0x3]
        %v378 = vlaneseq
        %v379 = vshrl.u32 %v378, 7
        %v380 = vsub.s32 0, %v379
        %v381 = vrot.slane %v376, %v380
        %v382 = vlaneseq
        %v383 = vshrl.u32 %v382, 7
        %v384 = vsub.s32 1, %v383
        %v385 = vrot.slane %v376, %v384
        %v388 = vmul.f32 %v373, %v381
        %v389 = vmul.f32 %v374, %v385
        %390 = vrot.lane.b32.xlu0 %v277, 113
        %v391 = vpop.permute.xlu0 %390
        %392 = vrot.lane.b32.xlu0 %v278, 113
        %v393 = vpop.permute.xlu0 %392
        %vm394 = vcmp.lt.s32.totalorder %v284, 113
        %v395 = vsel %vm394, %v391, %v393
        %v396 = vsel %vm394, %v393, %v391
        %s397 = scalar_lea.vmem %s5, 5
        %v398 = vld [vmem:[%s397] ss:$8 sm:$0x3]
        %v400 = vlaneseq
        %v401 = vshrl.u32 %v400, 7
        %v402 = vsub.s32 0, %v401
        %v403 = vrot.slane %v398, %v402
        %v404 = vlaneseq
        %v405 = vshrl.u32 %v404, 7
        %v406 = vsub.s32 1, %v405
        %v407 = vrot.slane %v398, %v406
        %v410 = vmul.f32 %v395, %v403
        %v411 = vmul.f32 %v396, %v407
        %412 = vrot.lane.b32.xlu0 %v277, 112
        %v413 = vpop.permute.xlu0 %412
        %414 = vrot.lane.b32.xlu0 %v278, 112
        %v415 = vpop.permute.xlu0 %414
        %vm416 = vcmp.lt.s32.totalorder %v284, 112
        %v417 = vsel %vm416, %v413, %v415
        %v418 = vsel %vm416, %v415, %v413
        %s419 = scalar_lea.vmem %s5, 6
        %v420 = vld [vmem:[%s419] ss:$8 sm:$0x3]
        %v422 = vlaneseq
        %v423 = vshrl.u32 %v422, 7
        %v424 = vsub.s32 0, %v423
        %v425 = vrot.slane %v420, %v424
        %v426 = vlaneseq
        %v427 = vshrl.u32 %v426, 7
        %v428 = vsub.s32 1, %v427
        %v429 = vrot.slane %v420, %v428
        %v432 = vmul.f32 %v417, %v425
        %v433 = vmul.f32 %v418, %v429
        %434 = vrot.lane.b32.xlu0 %v277, 111
        %v435 = vpop.permute.xlu0 %434
        %436 = vrot.lane.b32.xlu0 %v278, 111
        %v437 = vpop.permute.xlu0 %436
        %vm438 = vcmp.lt.s32.totalorder %v284, 111
        %v439 = vsel %vm438, %v435, %v437
        %v440 = vsel %vm438, %v437, %v435
        %s441 = scalar_lea.vmem %s5, 7
        %v442 = vld [vmem:[%s441] ss:$8 sm:$0x3]
        %v444 = vlaneseq
        %v445 = vshrl.u32 %v444, 7
        %v446 = vsub.s32 0, %v445
        %v447 = vrot.slane %v442, %v446
        %v448 = vlaneseq
        %v449 = vshrl.u32 %v448, 7
        %v450 = vsub.s32 1, %v449
        %v451 = vrot.slane %v442, %v450
        %v454 = vmul.f32 %v439, %v447
        %v455 = vmul.f32 %v440, %v451
        %v456 = vld [vmem:[%s1] sm:$0xff]
        %v457 = vld [vmem:[%s2] sm:$0xff]
        %459 = vset.pattern.permute.xlu0 0
        %460 = vperm.xlu0 %459, %v457
        %v461 = vpop.permute.xlu0 %460
        %vm463 = vcmask 588800
        %v465 = vsel %vm463, %v456, 0
        %467 = vmatprep.subr.mxu0 0.0
        %468 = vmatpush1.msra.mxu0 0.0
        %469 = vmatprep.subr.mxu0 0.0
        %470 = vmatpush1.msra.mxu0 0.0
        %471 = vmatprep.subr.mxu0 0.0
        %472 = vmatpush1.msra.mxu0 0.0
        %473 = vmatprep.subr.mxu0 0.0
        %474 = vmatpush1.msra.mxu0 0.0
        %475 = vmatprep.subr.mxu0 0.0
        %476 = vmatpush1.msra.mxu0 0.0
        %477 = vmatprep.subr.mxu0 0.0
        %478 = vmatpush1.msra.mxu0 0.0
        %479 = vmatprep.subr.mxu0 0.0
        %480 = vmatpush1.msra.mxu0 0.0
        %481 = vmatprep.subr.mxu0 %v455
        %482 = vmatpush1.msra.mxu0 %v454
        %483 = vmatprep.subr.mxu0 %v433
        %484 = vmatpush1.msra.mxu0 %v432
        %485 = vmatprep.subr.mxu0 %v411
        %486 = vmatpush1.msra.mxu0 %v410
        %487 = vmatprep.subr.mxu0 %v389
        %488 = vmatpush1.msra.mxu0 %v388
        %489 = vmatprep.subr.mxu0 %v278
        %490 = vmatpush1.msra.mxu0 %v277
        %491 = vmatprep.subr.mxu0 %v367
        %492 = vmatpush1.msra.mxu0 %v366
        %493 = vmatprep.subr.mxu0 %v345
        %494 = vmatpush1.msra.mxu0 %v344
        %495 = vmatprep.subr.mxu0 %v323
        %496 = vmatpush1.msra.mxu0 %v322
        %497 = vmatprep.subr.mxu0 %v301
        %498 = vmatpush1.msra.mxu0 %v300
        %499 = vmatprep.subr.mxu0 0.0
        %500 = vmatpush2.msra.mxu0 0.0
        %501 = vmatprep.subr.mxu0 0.0
        %502 = vmatpush2.msra.mxu0 0.0
        %503 = vmatprep.subr.mxu0 0.0
        %504 = vmatpush2.msra.mxu0 0.0
        %505 = vmatprep.subr.mxu0 0.0
        %506 = vmatpush2.msra.mxu0 0.0
        %507 = vmatprep.subr.mxu0 0.0
        %508 = vmatpush2.msra.mxu0 0.0
        %509 = vmatprep.subr.mxu0 0.0
        %510 = vmatpush2.msra.mxu0 0.0
        %511 = vmatprep.subr.mxu0 0.0
        %512 = vmatpush2.msra.mxu0 0.0
        %513 = vmatprep.subr.mxu0 0.0
        %514 = vmatpush2.msra.mxu0 0.0
        %515 = vmatprep.subr.mxu0 0.0
        %516 = vmatpush2.msra.mxu0 0.0
        %517 = vmatprep.subr.mxu0 0.0
        %518 = vmatpush2.msra.mxu0 0.0
        %519 = vmatprep.subr.mxu0 0.0
        %520 = vmatpush2.msra.mxu0 0.0
        %521 = vmatprep.subr.mxu0 0.0
        %522 = vmatpush2.msra.mxu0 0.0
        %523 = vmatprep.subr.mxu0 0.0
        %524 = vmatpush2.msra.mxu0 0.0
        %525 = vmatprep.subr.mxu0 0.0
        %526 = vmatpush2.msra.mxu0 0.0
        %527 = vmatprep.subr.mxu0 0.0
        %528 = vmatpush2.msra.mxu0 0.0
        %529 = vmatprep.subr.mxu0 0.0
        %530 = vmatpush2.msra.mxu0 0.0
        %531 = vmatprep.mubr.f32.mxu0 0.0
        %532 = vmatmul.mubr.f32.gmra.mxu0 %v465
        %v533 = vpop.f32.mrf.mxu0
        %v534 = vadd.f32 %v461, %v533
        %v535 = vpop.f32.mrf.mxu0
        %v536 = vadd.f32 %v461, %v535
        %537 = vdwg.mxu0
        %v538 = vmax.f32 %v534, 0.0
        %v539 = vmax.f32 %v536, 0.0
        %540 = vrot.lane.b32.xlu0 %v538, 17
        %v541 = vpop.permute.xlu0 %540
        %542 = vrot.lane.b32.xlu0 %v539, 17
        %v543 = vpop.permute.xlu0 %542
        %v544 = vsel %vm285, %v541, %v543
        %v545 = vsel %vm285, %v543, %v541
        %v546 = vmul.f32 %v545, %v293
        %v547 = vmul.f32 %v544, %v297
        %548 = vrot.lane.b32.xlu0 %v538, 16
        %v549 = vpop.permute.xlu0 %548
        %550 = vrot.lane.b32.xlu0 %v539, 16
        %v551 = vpop.permute.xlu0 %550
        %v552 = vsel %vm306, %v549, %v551
        %v553 = vsel %vm306, %v551, %v549
        %v554 = vmul.f32 %v553, %v315
        %v555 = vmul.f32 %v552, %v319
        %556 = vrot.lane.b32.xlu0 %v538, 15
        %v557 = vpop.permute.xlu0 %556
        %558 = vrot.lane.b32.xlu0 %v539, 15
        %v559 = vpop.permute.xlu0 %558
        %v560 = vsel %vm328, %v557, %v559
        %v561 = vsel %vm328, %v559, %v557
        %v562 = vmul.f32 %v561, %v337
        %v563 = vmul.f32 %v560, %v341
        %564 = vrot.lane.b32.xlu0 %v538, 1
        %v565 = vpop.permute.xlu0 %564
        %566 = vrot.lane.b32.xlu0 %v539, 1
        %v567 = vpop.permute.xlu0 %566
        %v568 = vsel %vm350, %v565, %v567
        %v569 = vsel %vm350, %v567, %v565
        %v570 = vmul.f32 %v569, %v359
        %v571 = vmul.f32 %v568, %v363
        %572 = vrot.lane.b32.xlu0 %v538, 127
        %v573 = vpop.permute.xlu0 %572
        %574 = vrot.lane.b32.xlu0 %v539, 127
        %v575 = vpop.permute.xlu0 %574
        %v576 = vsel %vm372, %v573, %v575
        %v577 = vsel %vm372, %v575, %v573
        %v578 = vmul.f32 %v576, %v381
        %v579 = vmul.f32 %v577, %v385
        %580 = vrot.lane.b32.xlu0 %v538, 113
        %v581 = vpop.permute.xlu0 %580
        %582 = vrot.lane.b32.xlu0 %v539, 113
        %v583 = vpop.permute.xlu0 %582
        %v584 = vsel %vm394, %v581, %v583
        %v585 = vsel %vm394, %v583, %v581
        %v586 = vmul.f32 %v584, %v403
        %v587 = vmul.f32 %v585, %v407
        %588 = vrot.lane.b32.xlu0 %v538, 112
        %v589 = vpop.permute.xlu0 %588
        %590 = vrot.lane.b32.xlu0 %v539, 112
        %v591 = vpop.permute.xlu0 %590
        %v592 = vsel %vm416, %v589, %v591
        %v593 = vsel %vm416, %v591, %v589
        %v594 = vmul.f32 %v592, %v425
        %v595 = vmul.f32 %v593, %v429
        %596 = vrot.lane.b32.xlu0 %v538, 111
        %v597 = vpop.permute.xlu0 %596
        %598 = vrot.lane.b32.xlu0 %v539, 111
        %v599 = vpop.permute.xlu0 %598
        %v600 = vsel %vm438, %v597, %v599
        %v601 = vsel %vm438, %v599, %v597
        %v602 = vmul.f32 %v600, %v447
        %v603 = vmul.f32 %v601, %v451
        %v604 = vld [vmem:[%s3] sm:$0xff]
        %v605 = vld [vmem:[%s4] sm:$0xff]
        %607 = vset.pattern.permute.xlu0 0
        %608 = vperm.xlu0 %607, %v605
        %v609 = vpop.permute.xlu0 %608
        %v612 = vsel %vm463, %v604, 0
        %614 = vmatprep.subr.mxu0 0.0
        %615 = vmatpush1.msra.mxu0 0.0
        %616 = vmatprep.subr.mxu0 0.0
        %617 = vmatpush1.msra.mxu0 0.0
        %618 = vmatprep.subr.mxu0 0.0
        %619 = vmatpush1.msra.mxu0 0.0
        %620 = vmatprep.subr.mxu0 0.0
        %621 = vmatpush1.msra.mxu0 0.0
        %622 = vmatprep.subr.mxu0 0.0
        %623 = vmatpush1.msra.mxu0 0.0
        %624 = vmatprep.subr.mxu0 0.0
        %625 = vmatpush1.msra.mxu0 0.0
        %626 = vmatprep.subr.mxu0 0.0
        %627 = vmatpush1.msra.mxu0 0.0
        %628 = vmatprep.subr.mxu0 %v603
        %629 = vmatpush1.msra.mxu0 %v602
        %630 = vmatprep.subr.mxu0 %v595
        %631 = vmatpush1.msra.mxu0 %v594
        %632 = vmatprep.subr.mxu0 %v587
        %633 = vmatpush1.msra.mxu0 %v586
        %634 = vmatprep.subr.mxu0 %v579
        %635 = vmatpush1.msra.mxu0 %v578
        %636 = vmatprep.subr.mxu0 %v539
        %637 = vmatpush1.msra.mxu0 %v538
        %638 = vmatprep.subr.mxu0 %v571
        %639 = vmatpush1.msra.mxu0 %v570
        %640 = vmatprep.subr.mxu0 %v563
        %641 = vmatpush1.msra.mxu0 %v562
        %642 = vmatprep.subr.mxu0 %v555
        %643 = vmatpush1.msra.mxu0 %v554
        %644 = vmatprep.subr.mxu0 %v547
        %645 = vmatpush1.msra.mxu0 %v546
        %646 = vmatprep.subr.mxu0 0.0
        %647 = vmatpush2.msra.mxu0 0.0
        %648 = vmatprep.subr.mxu0 0.0
        %649 = vmatpush2.msra.mxu0 0.0
        %650 = vmatprep.subr.mxu0 0.0
        %651 = vmatpush2.msra.mxu0 0.0
        %652 = vmatprep.subr.mxu0 0.0
        %653 = vmatpush2.msra.mxu0 0.0
        %654 = vmatprep.subr.mxu0 0.0
        %655 = vmatpush2.msra.mxu0 0.0
        %656 = vmatprep.subr.mxu0 0.0
        %657 = vmatpush2.msra.mxu0 0.0
        %658 = vmatprep.subr.mxu0 0.0
        %659 = vmatpush2.msra.mxu0 0.0
        %660 = vmatprep.subr.mxu0 0.0
        %661 = vmatpush2.msra.mxu0 0.0
        %662 = vmatprep.subr.mxu0 0.0
        %663 = vmatpush2.msra.mxu0 0.0
        %664 = vmatprep.subr.mxu0 0.0
        %665 = vmatpush2.msra.mxu0 0.0
        %666 = vmatprep.subr.mxu0 0.0
        %667 = vmatpush2.msra.mxu0 0.0
        %668 = vmatprep.subr.mxu0 0.0
        %669 = vmatpush2.msra.mxu0 0.0
        %670 = vmatprep.subr.mxu0 0.0
        %671 = vmatpush2.msra.mxu0 0.0
        %672 = vmatprep.subr.mxu0 0.0
        %673 = vmatpush2.msra.mxu0 0.0
        %674 = vmatprep.subr.mxu0 0.0
        %675 = vmatpush2.msra.mxu0 0.0
        %676 = vmatprep.subr.mxu0 0.0
        %677 = vmatpush2.msra.mxu0 0.0
        %678 = vmatprep.mubr.f32.mxu0 0.0
        %679 = vmatmul.mubr.f32.gmra.mxu0 %v612
        %v680 = vpop.f32.mrf.mxu0
        %v681 = vadd.f32 %v609, %v680
        %v682 = vpop.f32.mrf.mxu0
        %v683 = vadd.f32 %v609, %v682
        %684 = vdwg.mxu0
        %v685 = vmax.f32 %v681, 0.0
        %v686 = vmax.f32 %v683, 0.0
        %687 = vrot.lane.b32.xlu0 %v685, 127
        %v688 = vpop.permute.xlu0 %687
        %689 = vrot.lane.b32.xlu0 %v686, 127
        %v690 = vpop.permute.xlu0 %689
        %v691 = vsel %vm372, %v688, %v690
        %v692 = vsel %vm372, %v690, %v688
        %v693 = vmax.f32 %v685, %v691
        %v694 = vmax.f32 %v686, %v692
        %695 = vrot.lane.b32.xlu0 %v693, 112
        %v696 = vpop.permute.xlu0 %695
        %697 = vrot.lane.b32.xlu0 %v694, 112
        %v698 = vpop.permute.xlu0 %697
        %v699 = vsel %vm416, %v696, %v698
        %v700 = vsel %vm416, %v698, %v696
        %v701 = vmax.f32 %v693, %v699
        %v702 = vmax.f32 %v694, %v700
        %v703 = vld [vmem:[%s6] sm:$0xff]
        %v704 = vld [vmem:[%s6 + $0x8] sm:$0xff]
        %v705 = vld [vmem:[%s6 + $0x10] sm:$0xff]
        %v706 = vld [vmem:[%s6 + $0x18] sm:$0xff]
        %v707 = vld [vmem:[%s6 + $0x20] sm:$0xff]
        %v708 = vld [vmem:[%s6 + $0x28] sm:$0xff]
        %v709 = vld [vmem:[%s6 + $0x30] sm:$0xff]
        %v710 = vld [vmem:[%s6 + $0x38] sm:$0xff]
        %v711 = vld [vmem:[%s6 + $0x40] sm:$0xff]
        %v712 = vld [vmem:[%s6 + $0x48] sm:$0xff]
        %v713 = vld [vmem:[%s6 + $0x50] sm:$0xff]
        %v714 = vld [vmem:[%s6 + $0x58] sm:$0xff]
        %v715 = vld [vmem:[%s6 + $0x60] sm:$0xff]
        %v716 = vld [vmem:[%s6 + $0x68] sm:$0xff]
        %v717 = vld [vmem:[%s6 + $0x70] sm:$0xff]
        %v718 = vld [vmem:[%s6 + $0x78] sm:$0xff]
        %v719 = vld [vmem:[%s6 + $0x80] sm:$0xff]
        %v720 = vld [vmem:[%s6 + $0x88] sm:$0xff]
        %v721 = vld [vmem:[%s6 + $0x90] sm:$0xff]
        %v722 = vld [vmem:[%s6 + $0x98] sm:$0xff]
        %v723 = vld [vmem:[%s6 + $0xa0] sm:$0xff]
        %v724 = vld [vmem:[%s6 + $0xa8] sm:$0xff]
        %v725 = vld [vmem:[%s6 + $0xb0] sm:$0xff]
        %v726 = vld [vmem:[%s6 + $0xb8] sm:$0xff]
        %v727 = vld [vmem:[%s6 + $0xc0] sm:$0xff]
        %v728 = vld [vmem:[%s6 + $0xc8] sm:$0xff]
        %v729 = vld [vmem:[%s6 + $0xd0] sm:$0xff]
        %v730 = vld [vmem:[%s6 + $0xd8] sm:$0xff]
        %v731 = vld [vmem:[%s6 + $0xe0] sm:$0xff]
        %v732 = vld [vmem:[%s6 + $0xe8] sm:$0xff]
        %v733 = vld [vmem:[%s6 + $0xf0] sm:$0xff]
        %v734 = vld [vmem:[%s6 + $0xf8] sm:$0xff]
        %735 = vmatprep.subr.mxu0 0.0
        %736 = vmatpush1.msra.mxu0 %v718
        %737 = vmatprep.subr.mxu0 0.0
        %738 = vmatpush1.msra.mxu0 %v717
        %739 = vmatprep.subr.mxu0 0.0
        %740 = vmatpush1.msra.mxu0 %v716
        %741 = vmatprep.subr.mxu0 0.0
        %742 = vmatpush1.msra.mxu0 %v715
        %743 = vmatprep.subr.mxu0 0.0
        %744 = vmatpush1.msra.mxu0 %v714
        %745 = vmatprep.subr.mxu0 0.0
        %746 = vmatpush1.msra.mxu0 %v713
        %747 = vmatprep.subr.mxu0 0.0
        %748 = vmatpush1.msra.mxu0 %v712
        %749 = vmatprep.subr.mxu0 0.0
        %750 = vmatpush1.msra.mxu0 %v711
        %751 = vmatprep.subr.mxu0 0.0
        %752 = vmatpush1.msra.mxu0 %v710
        %753 = vmatprep.subr.mxu0 0.0
        %754 = vmatpush1.msra.mxu0 %v709
        %755 = vmatprep.subr.mxu0 0.0
        %756 = vmatpush1.msra.mxu0 %v708
        %757 = vmatprep.subr.mxu0 0.0
        %758 = vmatpush1.msra.mxu0 %v707
        %759 = vmatprep.subr.mxu0 0.0
        %760 = vmatpush1.msra.mxu0 %v706
        %761 = vmatprep.subr.mxu0 0.0
        %762 = vmatpush1.msra.mxu0 %v705
        %763 = vmatprep.subr.mxu0 0.0
        %764 = vmatpush1.msra.mxu0 %v704
        %765 = vmatprep.subr.mxu0 0.0
        %766 = vmatpush1.msra.mxu0 %v703
        %767 = vmatprep.subr.mxu0 0.0
        %768 = vmatpush2.msra.mxu0 %v734
        %769 = vmatprep.subr.mxu0 0.0
        %770 = vmatpush2.msra.mxu0 %v733
        %771 = vmatprep.subr.mxu0 0.0
        %772 = vmatpush2.msra.mxu0 %v732
        %773 = vmatprep.subr.mxu0 0.0
        %774 = vmatpush2.msra.mxu0 %v731
        %775 = vmatprep.subr.mxu0 0.0
        %776 = vmatpush2.msra.mxu0 %v730
        %777 = vmatprep.subr.mxu0 0.0
        %778 = vmatpush2.msra.mxu0 %v729
        %779 = vmatprep.subr.mxu0 0.0
        %780 = vmatpush2.msra.mxu0 %v728
        %781 = vmatprep.subr.mxu0 0.0
        %782 = vmatpush2.msra.mxu0 %v727
        %783 = vmatprep.subr.mxu0 0.0
        %784 = vmatpush2.msra.mxu0 %v726
        %785 = vmatprep.subr.mxu0 0.0
        %786 = vmatpush2.msra.mxu0 %v725
        %787 = vmatprep.subr.mxu0 0.0
        %788 = vmatpush2.msra.mxu0 %v724
        %789 = vmatprep.subr.mxu0 0.0
        %790 = vmatpush2.msra.mxu0 %v723
        %791 = vmatprep.subr.mxu0 0.0
        %792 = vmatpush2.msra.mxu0 %v722
        %793 = vmatprep.subr.mxu0 0.0
        %794 = vmatpush2.msra.mxu0 %v721
        %795 = vmatprep.subr.mxu0 0.0
        %796 = vmatpush2.msra.mxu0 %v720
        %797 = vmatprep.subr.mxu0 0.0
        %798 = vmatpush2.msra.mxu0 %v719
        %799 = vmatprep.mubr.f32.mxu0 %v702
        %800 = vmatmul.mubr.f32.gmra.mxu0 %v701
        %v801 = vpop.f32.mrf.mxu0
        %v802 = vadd.f32 0.0, %v801
        %v803 = vpop.f32.mrf.mxu0
        %804 = vdwg.mxu0
        %vm805 = vcmask 523264
        %806 = vst.msk [vmem:[%s271] sm:$0xff] %vm805, %v802
        %s807 = sand.u32 %s181, 1
        %s808 = scalar_lea.sflag [#allocation3], %s807
        %s809 = sand.u32 %s181, 1
        %s810 = smul.addr %s809, 8
        %s811 = scalar_lea.vmem [#allocation2], %s810
        // Predicated region
        $region49: #{tpu_custom_call.1} parent=47 // pred_check
          %p812 = pneg %p191
        $region50: #{tpu_custom_call.1} parent=47 // pred_check_branch
          %814 = sbr.rel (%p812) target = $region52
        $region51: #{tpu_custom_call.1} parent=47 // pred_region
          %s816 = ssub.s32 128, 128
          %817 = vsyncadd %s808, %s816
          %s818 = smul.addr %s21, 128
          %s819 = scalar_lea.hbm %s7, %s818
          %s821 = sshll.u32 %s811, 4
          %s822 = int_to_ptr.vmem [resolvable:$true] %s821
          %824 = dma.vmem_to_hbm [thread:$0]  %s822, 128, %s819, %s808
        $region52: #{tpu_custom_call.1} parent=47 // pred_fallthru
          _
      $region48: #{tpu_custom_call.1} parent=5 // pred_fallthru
        _
      %p825 = scmp.le.s32.totalorder 2, %s16
      // Predicated region
      $region53: #{tpu_custom_call.1} parent=5 // pred_check
        %p826 = pneg %p825
      $region54: #{tpu_custom_call.1} parent=5 // pred_check_branch
        %828 = sbr.rel (%p826) target = $region56
      $region55: #{tpu_custom_call.1} parent=5 // pred_region
        %s829 = ssub.s32 %s16, 2
        // Predicated region
        $region57: #{tpu_custom_call.1} parent=55 // pred_check
          %p830 = pneg %p197
        $region58: #{tpu_custom_call.1} parent=55 // pred_check_branch
          %832 = sbr.rel (%p830) target = $region60
        $region59: #{tpu_custom_call.1} parent=55 // pred_region
          %s833 = sand.u32 %s182, 1
          %s834 = scalar_lea.sflag [#allocation3], %s833
          %s835 = sand.u32 %s182, 1
          %s836 = smul.addr %s835, 8
          %s837 = scalar_lea.vmem [#allocation2], %s836
          %838 = dma.done %s834, 128
        $region60: #{tpu_custom_call.1} parent=55 // pred_fallthru
          _
      $region56: #{tpu_custom_call.1} parent=5 // pred_fallthru
        _
    $region6: #{tpu_custom_call.1} parent=1 // loop_footer
      %s20 = sadd.s32 1, %s16
    $region7: #{tpu_custom_call.1} parent=1 // loop_footer_branch
      %15 = sbr.rel target = $region3
    $region8: #{tpu_custom_call.1} parent=1 // loop_exit
      _
    %839 = vsyncpa [#allocation3], 1
    %s840 = scalar_lea.sflag [#allocation3], 1
    %841 = vsyncpa %s840, 1

</llo_original>
